<compile_context>
chip_gen: v7x
topology: tpu7x:2x2x1
jax: 0.10.0
libtpu: 0.0.40
codegen_flags: <defaults>
</compile_context>

<pallas_src>
import jax
import jax.numpy as jnp
from jax.experimental import pallas as pl
from jax.experimental.pallas import tpu as pltpu


# ---------------------------------------------------------------------------
# Shared gate math (f32, full-width transcendentals over the (1,4H) vreg).
# ---------------------------------------------------------------------------
def _lstm_gates(gates, c_prev, H):
    sg = jax.nn.sigmoid(gates)          # one EUP pass over all 4H lanes
    th = jnp.tanh(gates)                # one EUP pass over all 4H lanes
    i_g = sg[:, 0 * H:1 * H]
    f_g = sg[:, 1 * H:2 * H]
    g_g = th[:, 2 * H:3 * H]
    o_g = sg[:, 3 * H:4 * H]
    c_new = f_g * c_prev + i_g * g_g
    h_new = o_g * jnp.tanh(c_new)
    return h_new, c_new


# ---------------------------------------------------------------------------
# Kernel 1: single tracker step (original Tracker.forward semantics).
# ---------------------------------------------------------------------------
def _tracker_step_kernel(s2_ref, s1_ref, b1_ref, hc_ref, w_ref, b_ref,
                         hc_out_ref):
    """s2/s1/b1: (1,2H) f32; hc: (1,2H) packed [h|c]; w: (4H,4H) bf16
    (row-stacked [W_ih^T; W_hh^T], gate-packed cols i|f|g|o); b: (1,4H) f32."""
    H = hc_ref.shape[1] // 2
    h_prev = hc_ref[:, :H]
    c_prev = hc_ref[:, H:]
    # In-kernel concat: [s2h | s1h | b1h | h_prev] -> (1,4H); no HBM xh.
    xh = jnp.concatenate(
        [s2_ref[:, :H], s1_ref[:, :H], b1_ref[:, :H], h_prev], axis=1)
    gates = jnp.dot(xh.astype(w_ref.dtype), w_ref[...],
                    preferred_element_type=jnp.float32) + b_ref[...]
    h_new, c_new = _lstm_gates(gates, c_prev, H)
    hc_out_ref[...] = jnp.concatenate([h_new, c_new], axis=1)


@jax.jit
def tracker_step(s2, s1, b1, hc, w_fused_bf16, b_fused):
    """One Tracker step with fixed-shape args.

    s2, s1, b1 : (2H,)   stack[-2], stack[-1], buffer[0]  (sliced by caller)
    hc         : (1, 2H) packed [h | c] tracker state
    returns    : (1, 2H) packed [h' | c']
    """
    H = hc.shape[1] // 2
    assert (4 * H) % 128 == 0, "kernel tuned for 4*H a multiple of 128 (H=32)"
    vmem = pl.BlockSpec(memory_space=pltpu.MemorySpace.VMEM)
    cost = pl.CostEstimate(
        flops=2 * (4 * H) * (4 * H),
        transcendentals=2 * 4 * H + H,
        bytes_accessed=(4 * H) * (4 * H) * 2
        + (3 * 2 * H + 2 * H + 4 * H + 2 * H) * 4,
    )
    return pl.pallas_call(
        _tracker_step_kernel,
        out_shape=jax.ShapeDtypeStruct((1, 2 * H), jnp.float32),
        in_specs=[vmem] * 6,
        out_specs=vmem,
        cost_estimate=cost,
    )(s2.reshape(1, -1), s1.reshape(1, -1), b1.reshape(1, -1),
      hc, w_fused_bf16, b_fused)


# ---------------------------------------------------------------------------
# Kernel 2: T tracker steps in ONE pallas_call (VMEM-resident weights,
# h/c carried in VMEM scratch across grid iterations).
# ---------------------------------------------------------------------------
def _tracker_scan_kernel(xs_ref, hc0_ref, w_ref, b_ref, hcs_ref, xh_s, c_s):
    """xs: (1,1,3H) this step's [s2h|s1h|b1h]; hc0: (1,2H) initial [h|c];
    w: (4H,4H) bf16 resident; b: (1,4H) f32 resident; hcs: (1,1,2H) output.
    xh_s: (1,4H) f32 scratch holding [x | h_carry]; c_s: (1,H) f32 c carry."""
    H = hc0_ref.shape[1] // 2
    t = pl.program_id(0)

    @pl.when(t == 0)
    def _():
        # Seed the VMEM-resident recurrent state from the initial packed hc.
        xh_s[:, 3 * H:] = hc0_ref[:, :H]     # h carried in last H lanes of xh
        c_s[...] = hc0_ref[:, H:]

    # Stream this step's cell input into the first 3H lanes of the xh scratch.
    xh_s[:, :3 * H] = xs_ref[0]

    gates = jnp.dot(xh_s[...].astype(w_ref.dtype), w_ref[...],
                    preferred_element_type=jnp.float32) + b_ref[...]
    h_new, c_new = _lstm_gates(gates, c_s[...], H)

    # Carry state in VMEM; never leaves the chip between steps.
    xh_s[:, 3 * H:] = h_new
    c_s[...] = c_new
    hcs_ref[0] = jnp.concatenate([h_new, c_new], axis=1)


@jax.jit
def tracker_scan(xs, hc0, w_fused_bf16, b_fused):
    """Run T tracker steps inside one pallas_call.

    xs  : (T, 1, 3H) per-step cell inputs [s2h | s1h | b1h]
    hc0 : (1, 2H)    initial packed [h | c]
    returns (T, 1, 2H) packed [h_t | c_t] for every step.
    """
    T = xs.shape[0]
    H = hc0.shape[1] // 2
    assert (4 * H) % 128 == 0, "kernel tuned for 4*H a multiple of 128 (H=32)"
    cost = pl.CostEstimate(
        flops=T * 2 * (4 * H) * (4 * H),
        transcendentals=T * (2 * 4 * H + H),
        bytes_accessed=(4 * H) * (4 * H) * 2
        + T * (3 * H + 2 * H) * 4 + (2 * H + 4 * H) * 4,
    )
    grid_spec = pltpu.PrefetchScalarGridSpec(
        num_scalar_prefetch=0,
        grid=(T,),
        in_specs=[
            # Streamed per-step input: block index advances with t.
            pl.BlockSpec((1, 1, 3 * H), lambda t: (t, 0, 0)),
            # Constant block index -> DMA'd once, stays VMEM-resident.
            pl.BlockSpec((1, 2 * H), lambda t: (0, 0)),
            pl.BlockSpec((4 * H, 4 * H), lambda t: (0, 0)),
            pl.BlockSpec((1, 4 * H), lambda t: (0, 0)),
        ],
        out_specs=pl.BlockSpec((1, 1, 2 * H), lambda t: (t, 0, 0)),
        scratch_shapes=[
            pltpu.VMEM((1, 4 * H), jnp.float32),   # [x | h] staging / h carry
            pltpu.VMEM((1, H), jnp.float32),       # c carry
        ],
    )
    return pl.pallas_call(
        _tracker_scan_kernel,
        out_shape=jax.ShapeDtypeStruct((T, 1, 2 * H), jnp.float32),
        grid_spec=grid_spec,
        compiler_params=pltpu.CompilerParams(
            dimension_semantics=("arbitrary",)),   # recurrence is sequential
        cost_estimate=cost,
    )(xs, hc0, w_fused_bf16, b_fused)


# ---------------------------------------------------------------------------
# Parameters (PyTorch-shaped LSTMCell params + precomputed fused kernel form).
# ---------------------------------------------------------------------------
def init_tracker_params(key, hidden_size):
    k1, k2, k3, k4 = jax.random.split(key, 4)
    bound = 1.0 / (hidden_size ** 0.5)
    w_ih = jax.random.uniform(k1, (4 * hidden_size, 3 * hidden_size),
                              jnp.float32, -bound, bound)
    w_hh = jax.random.uniform(k2, (4 * hidden_size, hidden_size),
                              jnp.float32, -bound, bound)
    b_ih = jax.random.uniform(k3, (4 * hidden_size,), jnp.float32, -bound, bound)
    b_hh = jax.random.uniform(k4, (4 * hidden_size,), jnp.float32, -bound, bound)
    # Fused, transposed, gate-packed weight: [W_ih^T ; W_hh^T] -> (4H, 4H).
    w_fused = jnp.concatenate([w_ih, w_hh], axis=1).T
    return {
        "w_ih": w_ih, "w_hh": w_hh, "b_ih": b_ih, "b_hh": b_hh,   # reference
        "w_fused_bf16": w_fused.astype(jnp.bfloat16),             # kernel weight
        "b_fused": (b_ih + b_hh).reshape(1, -1),                  # kernel bias
    }


# ---------------------------------------------------------------------------
# Pure-JAX references.
# ---------------------------------------------------------------------------
def _lstm_ref(x, h, c, params, quantize):
    """x: (1,3H), h/c: (1,H).  quantize=True mimics the kernel's bf16 matmul
    operands (tight check); quantize=False is the full-f32 PyTorch semantics
    (loose check)."""
    if quantize:
        xh = jnp.concatenate([x, h], axis=1).astype(jnp.bfloat16).astype(jnp.float32)
        gates = xh @ params["w_fused_bf16"].astype(jnp.float32) + params["b_fused"]
    else:
        gates = (x @ params["w_ih"].T + params["b_ih"]
                 + h @ params["w_hh"].T + params["b_hh"])
    i_g, f_g, g_g, o_g = jnp.split(gates, 4, axis=-1)
    c_new = jax.nn.sigmoid(f_g) * c + jax.nn.sigmoid(i_g) * jnp.tanh(g_g)
    h_new = jax.nn.sigmoid(o_g) * jnp.tanh(c_new)
    return h_new, c_new


if __name__ == "__main__":
    H = 32
    key = jax.random.PRNGKey(0)
    k_params, k_stack, k_buf, k_h, k_c, k_xs = jax.random.split(key, 6)

    params = init_tracker_params(k_params, H)

    # SPINN-style inputs: (2H,) [h | c] vectors on the stack / buffer.
    stack = [jax.random.normal(k, (2 * H,), jnp.float32)
             for k in jax.random.split(k_stack, 3)]
    buffer = [jax.random.normal(k, (2 * H,), jnp.float32)
              for k in jax.random.split(k_buf, 2)]
    h0 = jax.random.normal(k_h, (1, H), jnp.float32)
    c0 = jax.random.normal(k_c, (1, H), jnp.float32)
    hc0 = jnp.concatenate([h0, c0], axis=1)                    # packed state

    # ------------------------------------------------------------------
    # 1) Per-step kernel (original Tracker.forward semantics).
    #    Slice the dynamic-length lists OUTSIDE the jitted call.
    # ------------------------------------------------------------------
    s2, s1, b1 = stack[-2], stack[-1], buffer[0]
    hc1 = tracker_step(s2, s1, b1, hc0,
                       params["w_fused_bf16"], params["b_fused"])
    jax.block_until_ready(hc1)
    h_out, c_out = hc1[0, :H], hc1[0, H:]

    x_step = jnp.concatenate([s2[:H], s1[:H], b1[:H]]).reshape(1, -1)
    h_ref, c_ref = _lstm_ref(x_step, h0, c0, params, quantize=False)
    h_q, c_q = _lstm_ref(x_step, h0, c0, params, quantize=True)

    assert h_out.shape == (H,) and c_out.shape == (H,)
    assert jnp.allclose(h_out, h_ref[0], atol=5e-2), float(jnp.max(jnp.abs(h_out - h_ref[0])))
    assert jnp.allclose(c_out, c_ref[0], atol=5e-2), float(jnp.max(jnp.abs(c_out - c_ref[0])))
    assert jnp.allclose(h_out, h_q[0], atol=5e-3), float(jnp.max(jnp.abs(h_out - h_q[0])))
    assert jnp.allclose(c_out, c_q[0], atol=5e-3), float(jnp.max(jnp.abs(c_out - c_q[0])))

    # ------------------------------------------------------------------
    # 2) Full-recurrence kernel: T tracker steps in one pallas_call.
    # ------------------------------------------------------------------
    T = 8
    xs = jax.random.normal(k_xs, (T, 1, 3 * H), jnp.float32)   # per-step [s2h|s1h|b1h]
    hcs = tracker_scan(xs, hc0, params["w_fused_bf16"], params["b_fused"])
    jax.block_until_ready(hcs)
    assert hcs.shape == (T, 1, 2 * H)

    h_f, c_f = h0, c0          # full-f32 reference state
    h_qq, c_qq = h0, c0        # bf16-operand reference state
    max_err_f = 0.0
    max_err_q = 0.0
    for t in range(T):
        x_t = xs[t]
        h_f, c_f = _lstm_ref(x_t, h_f, c_f, params, quantize=False)
        h_qq, c_qq = _lstm_ref(x_t, h_qq, c_qq, params, quantize=True)
        hc_t = hcs[t]
        max_err_f = max(max_err_f,
                        float(jnp.max(jnp.abs(hc_t[:, :H] - h_f))),
                        float(jnp.max(jnp.abs(hc_t[:, H:] - c_f))))
        max_err_q = max(max_err_q,
                        float(jnp.max(jnp.abs(hc_t[:, :H] - h_qq))),
                        float(jnp.max(jnp.abs(hc_t[:, H:] - c_qq))))
    assert max_err_f < 1e-1, max_err_f     # bf16 weights vs full-f32 PyTorch math
    assert max_err_q < 5e-3, max_err_q     # same bf16-rounded operands: tight

    print("KERNEL_OK")
</pallas_src>

<mosaic_0001>
module attributes {stable_mosaic.version = 11 : i64} {
  func.func @_tracker_step_kernel(%arg0: memref<1x64xf32, #tpu.memory_space<vmem>>, %arg1: memref<1x64xf32, #tpu.memory_space<vmem>>, %arg2: memref<1x64xf32, #tpu.memory_space<vmem>>, %arg3: memref<1x64xf32, #tpu.memory_space<vmem>>, %arg4: memref<128x128xbf16, #tpu.memory_space<vmem>>, %arg5: memref<1x128xf32, #tpu.memory_space<vmem>>, %arg6: memref<1x64xf32, #tpu.memory_space<vmem>>) attributes {dimension_semantics = [], scalar_prefetch = 0 : i64, scratch_operands = 0 : i64, tpu.core_type = #tpu.core_type<tc>} {
    %c0 = arith.constant 0 : index
    %c0_0 = arith.constant 0 : index
    %0 = vector.load %arg3[%c0, %c0_0] : memref<1x64xf32, #tpu.memory_space<vmem>>, vector<1x32xf32>
    %c0_1 = arith.constant 0 : index
    %c32 = arith.constant 32 : index
    %1 = vector.load %arg3[%c0_1, %c32] : memref<1x64xf32, #tpu.memory_space<vmem>>, vector<1x32xf32>
    %c0_2 = arith.constant 0 : index
    %c0_3 = arith.constant 0 : index
    %2 = vector.load %arg0[%c0_2, %c0_3] : memref<1x64xf32, #tpu.memory_space<vmem>>, vector<1x32xf32>
    %c0_4 = arith.constant 0 : index
    %c0_5 = arith.constant 0 : index
    %3 = vector.load %arg1[%c0_4, %c0_5] : memref<1x64xf32, #tpu.memory_space<vmem>>, vector<1x32xf32>
    %c0_6 = arith.constant 0 : index
    %c0_7 = arith.constant 0 : index
    %4 = vector.load %arg2[%c0_6, %c0_7] : memref<1x64xf32, #tpu.memory_space<vmem>>, vector<1x32xf32>
    %5 = tpu.concatenate %2, %3, %4, %0 in 1 : vector<1x32xf32>, vector<1x32xf32>, vector<1x32xf32>, vector<1x32xf32> -> vector<1x128xf32>
    %6 = arith.truncf %5 : vector<1x128xf32> to vector<1x128xbf16>
    %c0_8 = arith.constant 0 : index
    %c0_9 = arith.constant 0 : index
    %7 = vector.load %arg4[%c0_8, %c0_9] : memref<128x128xbf16, #tpu.memory_space<vmem>>, vector<128x128xbf16>
    %cst = arith.constant dense<0.000000e+00> : vector<1x128xf32>
    %8 = tpu.matmul %6, %7, %cst {dimension_numbers = #tpu.dot_dimension_numbers<[1], [0], [0], [1], [0, 0, 1, 1], [], []>} : vector<1x128xbf16>, vector<128x128xbf16>, vector<1x128xf32> -> vector<1x128xf32>
    %c0_10 = arith.constant 0 : index
    %c0_11 = arith.constant 0 : index
    %9 = vector.load %arg5[%c0_10, %c0_11] : memref<1x128xf32, #tpu.memory_space<vmem>>, vector<1x128xf32>
    %10 = arith.addf %8, %9 : vector<1x128xf32>
    %11 = arith.negf %10 : vector<1x128xf32>
    %12 = math.exp %11 : vector<1x128xf32>
    %cst_12 = arith.constant 1.000000e+00 : f32
    %13 = vector.broadcast %cst_12 : f32 to vector<1x128xf32>
    %14 = arith.addf %13, %12 : vector<1x128xf32>
    %15 = arith.divf %13, %14 : vector<1x128xf32>
    %16 = math.tanh %10 : vector<1x128xf32>
    %17 = vector.extract_strided_slice %15 {offsets = [0, 0], sizes = [1, 32], strides = [1, 1]} : vector<1x128xf32> to vector<1x32xf32>
    %18 = vector.extract_strided_slice %15 {offsets = [0, 32], sizes = [1, 32], strides = [1, 1]} : vector<1x128xf32> to vector<1x32xf32>
    %19 = vector.extract_strided_slice %16 {offsets = [0, 64], sizes = [1, 32], strides = [1, 1]} : vector<1x128xf32> to vector<1x32xf32>
    %20 = vector.extract_strided_slice %15 {offsets = [0, 96], sizes = [1, 32], strides = [1, 1]} : vector<1x128xf32> to vector<1x32xf32>
    %21 = arith.mulf %18, %1 : vector<1x32xf32>
    %22 = arith.mulf %17, %19 : vector<1x32xf32>
    %23 = arith.addf %21, %22 : vector<1x32xf32>
    %24 = math.tanh %23 : vector<1x32xf32>
    %25 = arith.mulf %20, %24 : vector<1x32xf32>
    %26 = tpu.concatenate %25, %23 in 1 : vector<1x32xf32>, vector<1x32xf32> -> vector<1x64xf32>
    %c0_13 = arith.constant 0 : index
    %c0_14 = arith.constant 0 : index
    %27 = vector.load %arg6[%c0_13, %c0_14] : memref<1x64xf32, #tpu.memory_space<vmem>>, vector<1x64xf32>
    tpu.vector_store %arg6[%c0_13, %c0_14], %26 {strides = array<i32>} : memref<1x64xf32, #tpu.memory_space<vmem>>, vector<1x64xf32>,
    return
  }
}

</mosaic_0001>

<llo_original>
// kernel: tracker_step.1
$region0: #{tracker_step.1}
  #allocation0 [shape = 'u32[]', space=smem, size = 0x4, offset = 0x4, fixed_abs, tag = 'smem constant byte address 0x4 - core index']
  #allocation1 [shape = 'u32[144,128]{1,0:T(1,128)}', space=vmem, size = 0x12000, scoped, tag = 'internal scratch']
  %s0 = inlined_call_operand.vmem [shape: f32[1,64], index: 0, kind: input, shape index: {}]
  %s1 = inlined_call_operand.vmem [shape: f32[1,64], index: 1, kind: input, shape index: {}]
  %s2 = inlined_call_operand.vmem [shape: f32[1,64], index: 2, kind: input, shape index: {}]
  %s3 = inlined_call_operand.vmem [shape: f32[1,64], index: 3, kind: input, shape index: {}]
  %s4 = inlined_call_operand.hbm [shape: bf16[128,128], index: 4, kind: input, shape index: {}]
  %s5 = inlined_call_operand.vmem [shape: f32[1,128], index: 5, kind: input, shape index: {}]
  %s6 = inlined_call_operand.hbm [shape: f32[1,64], index: 6, kind: output, shape index: {}]
  %s7 = sld [smem:[#allocation0]]
  $region38: #{tracker_step.1} parent=0
    _
  %s9 = ssub.s32 1, %s7
  %s10 = scalar_select 0, %s9, %s7
  $region1: #{tracker_step.1} parent=0
    #allocation2 [shape = 'u8[32768]{0}', space=vmem, size = 0x8000, scoped, tag = 'input window, operand 4, single buffered']
    #allocation3 [shape = 's32[1]{0}', space=sflag, size = 0x4, scoped, tag = 'scoped memory for tracker_step.1']
    #allocation4 [shape = 's32[1]{0}', space=sflag, size = 0x4, scoped, tag = 'scoped memory for tracker_step.1']
    #allocation5 [shape = 'u8[512]{0}', space=vmem, size = 0x400, scoped, tag = 'output window, operand 0, single buffered']
    %11 = vsyncpa [#allocation3], 0
    %12 = vsyncpa [#allocation4], 0
    // Predicated region
    $region2: #{tracker_step.1} parent=1 // pred_check
      _
    $region3: #{tracker_step.1} parent=1 // pred_check_branch
      %14 = sbr.rel (0) target = $region5
    $region4: #{tracker_step.1} parent=1 // pred_region
      _
    $region5: #{tracker_step.1} parent=1 // pred_fallthru
      _
    // Predicated region
    $region6: #{tracker_step.1} parent=1 // pred_check
      _
    $region7: #{tracker_step.1} parent=1 // pred_check_branch
      %16 = sbr.rel (0) target = $region9
    $region8: #{tracker_step.1} parent=1 // pred_region
      _
    $region9: #{tracker_step.1} parent=1 // pred_fallthru
      _
    // Predicated region
    $region10: #{tracker_step.1} parent=1 // pred_check
      _
    $region11: #{tracker_step.1} parent=1 // pred_check_branch
      %18 = sbr.rel (0) target = $region13
    $region12: #{tracker_step.1} parent=1 // pred_region
      _
    $region13: #{tracker_step.1} parent=1 // pred_fallthru
      _
    // Predicated region
    $region14: #{tracker_step.1} parent=1 // pred_check
      _
    $region15: #{tracker_step.1} parent=1 // pred_check_branch
      %20 = sbr.rel (0) target = $region17
    $region16: #{tracker_step.1} parent=1 // pred_region
      _
    $region17: #{tracker_step.1} parent=1 // pred_fallthru
      _
    // Predicated region
    $region18: #{tracker_step.1} parent=1 // pred_check
      _
    $region19: #{tracker_step.1} parent=1 // pred_check_branch
      %22 = sbr.rel (0) target = $region21
    $region20: #{tracker_step.1} parent=1 // pred_region
      %s24 = ssub.s32 1024, 1024
      %25 = vsyncadd [#allocation3], %s24
      %s26 = sshll.u32 [#allocation2], 4
      %s27 = int_to_ptr.vmem [resolvable:$true] %s26
      %32 = dma.hbm_to_vmem [thread:$0]  %s4, 1024, %s27, [#allocation3], 64, 64, 4
    $region21: #{tracker_step.1} parent=1 // pred_fallthru
      _
    // Predicated region
    $region22: #{tracker_step.1} parent=1 // pred_check
      _
    $region23: #{tracker_step.1} parent=1 // pred_check_branch
      %34 = sbr.rel (0) target = $region25
    $region24: #{tracker_step.1} parent=1 // pred_region
      _
    $region25: #{tracker_step.1} parent=1 // pred_fallthru
      _
    // Predicated region
    $region26: #{tracker_step.1} parent=1 // pred_check
      _
    $region27: #{tracker_step.1} parent=1 // pred_check_branch
      %36 = sbr.rel (0) target = $region29
    $region28: #{tracker_step.1} parent=1 // pred_region
      %37 = dma.done [#allocation3], 1024
    $region29: #{tracker_step.1} parent=1 // pred_fallthru
      _
    %v39 = vld [vmem:[%s3] sm:$0x1]
    %v40 = vld [vmem:[%s0] sm:$0x1]
    %v41 = vld [vmem:[%s1] sm:$0x1]
    %v42 = vld [vmem:[%s2] sm:$0x1]
    %v44 = vlaneseq
    %v45 = vshrl.u32 %v44, 7
    %v46 = vsub.s32 0, %v45
    %v47 = vrot.slane %v41, %v46
    %48 = vrot.lane.b32.xlu0 %v47, 32
    %v49 = vpop.permute.xlu0 %48
    %v52 = vlaneseq
    %v53 = vshrl.u32 %v52, 7
    %v54 = vsub.s32 0, %v53
    %v55 = vrot.slane %v42, %v54
    %56 = vrot.lane.b32.xlu0 %v55, 64
    %v57 = vpop.permute.xlu0 %56
    %v60 = vlaneseq
    %v61 = vshrl.u32 %v60, 7
    %v62 = vsub.s32 0, %v61
    %v63 = vrot.slane %v39, %v62
    %64 = vrot.lane.b32.xlu0 %v63, 96
    %v65 = vpop.permute.xlu0 %64
    %vm67 = vcmask 261120
    %v68 = vsel %vm67, %v40, %v49
    %vm69 = vcmask 523264
    %v70 = vsel %vm69, %v68, %v57
    %vm71 = vcmask 785408
    %v72 = vsel %vm71, %v70, %v65
    %v73 = vpack.c.bf16 %v72, %v72
    %v74 = vld [vmem:[#allocation2] sm:$0xf]
    %v75 = vld [vmem:[#allocation2 + $0x4] sm:$0xf]
    %v76 = vld [vmem:[#allocation2 + $0x8] sm:$0xf]
    %v77 = vld [vmem:[#allocation2 + $0xc] sm:$0xf]
    %v78 = vld [vmem:[#allocation2 + $0x10] sm:$0xf]
    %v79 = vld [vmem:[#allocation2 + $0x14] sm:$0xf]
    %v80 = vld [vmem:[#allocation2 + $0x18] sm:$0xf]
    %v81 = vld [vmem:[#allocation2 + $0x1c] sm:$0xf]
    %v82 = vld [vmem:[#allocation2 + $0x20] sm:$0xf]
    %v83 = vld [vmem:[#allocation2 + $0x24] sm:$0xf]
    %v84 = vld [vmem:[#allocation2 + $0x28] sm:$0xf]
    %v85 = vld [vmem:[#allocation2 + $0x2c] sm:$0xf]
    %v86 = vld [vmem:[#allocation2 + $0x30] sm:$0xf]
    %v87 = vld [vmem:[#allocation2 + $0x34] sm:$0xf]
    %v88 = vld [vmem:[#allocation2 + $0x38] sm:$0xf]
    %v89 = vld [vmem:[#allocation2 + $0x3c] sm:$0xf]
    %v90 = vld [vmem:[%s5] sm:$0x1]
    %v107 = vunpack.c.l.b16 %v74
    %v108 = vunpack.c.l.b16 %v75
    %v109 = vunpack.c.l.b16 %v76
    %v110 = vunpack.c.l.b16 %v77
    %v111 = vunpack.c.l.b16 %v78
    %v112 = vunpack.c.l.b16 %v79
    %v113 = vunpack.c.l.b16 %v80
    %v114 = vunpack.c.l.b16 %v81
    %v115 = vunpack.c.l.b16 %v82
    %v116 = vunpack.c.l.b16 %v83
    %v117 = vunpack.c.l.b16 %v84
    %v118 = vunpack.c.l.b16 %v85
    %v119 = vunpack.c.l.b16 %v86
    %v120 = vunpack.c.l.b16 %v87
    %v121 = vunpack.c.l.b16 %v88
    %v122 = vunpack.c.l.b16 %v89
    %v123 = vpack.c.b16 %v108, %v107
    %v124 = vpack.c.b16 %v110, %v109
    %v125 = vpack.c.b16 %v112, %v111
    %v126 = vpack.c.b16 %v114, %v113
    %v127 = vpack.c.b16 %v116, %v115
    %v128 = vpack.c.b16 %v118, %v117
    %v129 = vpack.c.b16 %v120, %v119
    %v130 = vpack.c.b16 %v122, %v121
    %139 = vmatprep.subr.bf16.mxu0 0
    %140 = vmatpush1.bf16.msra.mxu0 %v123
    %141 = vmatprep.subr.bf16.mxu0 0
    %142 = vmatpush1.bf16.msra.mxu0 %v124
    %143 = vmatprep.subr.bf16.mxu0 0
    %144 = vmatpush1.bf16.msra.mxu0 %v125
    %145 = vmatprep.subr.bf16.mxu0 0
    %146 = vmatpush1.bf16.msra.mxu0 %v126
    %147 = vmatprep.subr.bf16.mxu0 0
    %148 = vmatpush1.bf16.msra.mxu0 %v127
    %149 = vmatprep.subr.bf16.mxu0 0
    %150 = vmatpush1.bf16.msra.mxu0 %v128
    %151 = vmatprep.subr.bf16.mxu0 0
    %152 = vmatpush1.bf16.msra.mxu0 %v129
    %153 = vmatprep.subr.bf16.mxu0 0
    %154 = vmatpush1.bf16.msra.mxu0 %v130
    %155 = vmatprep.subr.bf16.mxu0 0
    %156 = vmatpush1.bf16.msra.mxu0 0
    %157 = vmatprep.subr.bf16.mxu0 0
    %158 = vmatpush1.bf16.msra.mxu0 0
    %159 = vmatprep.subr.bf16.mxu0 0
    %160 = vmatpush1.bf16.msra.mxu0 0
    %161 = vmatprep.subr.bf16.mxu0 0
    %162 = vmatpush1.bf16.msra.mxu0 0
    %163 = vmatprep.subr.bf16.mxu0 0
    %164 = vmatpush1.bf16.msra.mxu0 0
    %165 = vmatprep.subr.bf16.mxu0 0
    %166 = vmatpush1.bf16.msra.mxu0 0
    %167 = vmatprep.subr.bf16.mxu0 0
    %168 = vmatpush1.bf16.msra.mxu0 0
    %169 = vmatprep.subr.bf16.mxu0 0
    %170 = vmatpush1.bf16.msra.mxu0 0
    %171 = vmatprep.mubr.bf16.mxu0 0
    %172 = vmatmul.mubr.bf16.gmra.mrb[0].mxu0 %v73
    %v173 = vpop.f32.mrb[0].mxu0
    %v174 = vadd.f32 %v90, %v173
    %v175 = vpop.f32.mrb[0].mxu0
    %v176 = vpop.f32.mrb[0].mxu0
    %v177 = vpop.f32.mrb[0].mxu0
    %178 = vdwg.mxu0
    %v179 = vxor.u32 %v174, 2147483648
    %v180 = vmul.f32 %v179, 1.442695
    %v181 = vpow.pop %v180
    %v182 = vadd.f32 %v181, 1.0
    %v183 = vrcp.pop %v182
    %v184 = vmul.f32 1.0, %v183
    %v185 = vtanh.pop %v174
    %v186 = vmul.f32 %v184, %v39
    %188 = vrot.lane.b32.xlu0 %v185, 64
    %v189 = vpop.permute.xlu0 %188
    %v191 = vmul.f32 %v184, %v189
    %193 = vrot.lane.b32.xlu0 %v191, 32
    %v194 = vpop.permute.xlu0 %193
    %v196 = vadd.f32 %v186, %v194
    %v197 = vtanh.pop %v196
    %199 = vrot.lane.b32.xlu0 %v197, 64
    %v200 = vpop.permute.xlu0 %199
    %v202 = vmul.f32 %v184, %v200
    %204 = vrot.lane.b32.xlu0 %v202, 32
    %v205 = vpop.permute.xlu0 %204
    %v207 = vsel %vm67, %v205, %v196
    %vm208 = vcmask 516096
    %209 = vst.msk [vmem:[#allocation5] sm:$0x1] %vm208, %v207
    // Predicated region
    $region30: #{tracker_step.1} parent=1 // pred_check
      _
    $region31: #{tracker_step.1} parent=1 // pred_check_branch
      %211 = sbr.rel (0) target = $region33
    $region32: #{tracker_step.1} parent=1 // pred_region
      %s213 = ssub.s32 16, 16
      %214 = vsyncadd [#allocation4], %s213
      %s216 = sshll.u32 [#allocation5], 4
      %s217 = int_to_ptr.vmem [resolvable:$true] %s216
      %219 = dma.vmem_to_hbm [thread:$0]  %s217, 16, %s6, [#allocation4]
    $region33: #{tracker_step.1} parent=1 // pred_fallthru
      _
    // Predicated region
    $region34: #{tracker_step.1} parent=1 // pred_check
      _
    $region35: #{tracker_step.1} parent=1 // pred_check_branch
      %221 = sbr.rel (0) target = $region37
    $region36: #{tracker_step.1} parent=1 // pred_region
      %222 = dma.done [#allocation4], 16
    $region37: #{tracker_step.1} parent=1 // pred_fallthru
      _
    %223 = vsyncpa [#allocation3], 1
    %224 = vsyncpa [#allocation4], 1

</llo_original>
